<compile_context>
chip_gen: v6e
topology: v6e:2x2x1
jax: 0.10.0
libtpu: 0.0.40
codegen_flags: <defaults>
</compile_context>

<pallas_src>
import functools
import math

import jax
import jax.numpy as jnp
from jax.experimental import pallas as pl
from jax.experimental.pallas import tpu as pltpu


# ----------------------------------------------------------------------------
# Generation-aware sizing
# ----------------------------------------------------------------------------
def _tpu_vmem_capacity_bytes():
    try:
        info = pltpu.get_tpu_info()
        cap = getattr(info, "vmem_capacity_bytes", None)
        if cap:
            return int(cap)
    except Exception:
        pass
    return 64 * 1024 * 1024  # conservative (v7x) fallback


_VMEM_CAP = _tpu_vmem_capacity_bytes()
_VMEM_LIMIT = min(_VMEM_CAP * 3 // 4, 100 * 1024 * 1024)   # 96 MiB on 128 MiB parts, 48 MiB on v7x
_BIG_VMEM = _VMEM_CAP >= 100 * 1024 * 1024
_MAX_BLOCK_T = 32 if _BIG_VMEM else 16
_VOCAB_TILE_N = 1024 if _BIG_VMEM else 512


# ----------------------------------------------------------------------------
# Generic tiled matmul + bias: out = x @ w_t + b
#   x: (M, K) bf16, w_t: (K, N) bf16 (already transposed), b: (N,) f32.
# f32 MXU accumulation; output dtype configurable (bf16 for gates_x, f32 for
# logits). `full_m=True` keeps the whole activation slab resident so the big
# weight (e.g. H x V fc weight) is streamed from HBM exactly once.
# ----------------------------------------------------------------------------
def _matmul_bias_kernel(x_ref, w_ref, b_ref, o_ref):
    acc = jnp.dot(x_ref[...], w_ref[...], preferred_element_type=jnp.float32)
    o_ref[...] = (acc + b_ref[...]).astype(o_ref.dtype)


def matmul_bias(x, w_t, b, *, out_dtype=jnp.float32, tile_m=256, tile_n=512,
                full_m=False):
    M, K = x.shape
    N = w_t.shape[1]
    tm = M if (full_m or M < tile_m) else tile_m
    tn = N if N < tile_n else tile_n
    grid = (pl.cdiv(M, tm), pl.cdiv(N, tn))
    return pl.pallas_call(
        _matmul_bias_kernel,
        out_shape=jax.ShapeDtypeStruct((M, N), out_dtype),
        grid_spec=pltpu.PrefetchScalarGridSpec(
            num_scalar_prefetch=0,
            grid=grid,
            in_specs=[
                pl.BlockSpec((tm, K), lambda i, j: (i, 0)),
                pl.BlockSpec((K, tn), lambda i, j: (0, j)),
                pl.BlockSpec((1, tn), lambda i, j: (0, j)),
            ],
            out_specs=pl.BlockSpec((tm, tn), lambda i, j: (i, j)),
        ),
        compiler_params=pltpu.CompilerParams(
            dimension_semantics=("parallel", "parallel"),
            vmem_limit_bytes=_VMEM_LIMIT),
    )(x, w_t, b.reshape(1, N))


# ----------------------------------------------------------------------------
# Recurrent LSTM kernel: grid over time blocks; inside each grid step an
# unrolled fori_loop runs block_t timesteps. Only h @ W_hh^T (bf16 operands,
# f32 accumulation) and the f32 gate nonlinearities remain per step (input
# projection precomputed and stored bf16). (h, c) carry across grid steps in
# f32 VMEM scratch; final state stored once. Steps beyond `seq_len` (sequence
# padded to a multiple of block_t) are masked so hT/cT stay exact.
# ----------------------------------------------------------------------------
def _lstm_rec_kernel(gx_ref, h0_ref, c0_ref, whhT_ref,
                     out_ref, hT_ref, cT_ref, h_scr, c_scr, *, seq_len):
    tb = pl.program_id(0)

    @pl.when(tb == 0)
    def _():
        h_scr[...] = h0_ref[...]
        c_scr[...] = c0_ref[...]

    H = h_scr.shape[-1]
    block_t = gx_ref.shape[0]
    valid = seq_len - tb * block_t       # >= block_t for all non-tail blocks

    def step(i, carry):
        h_bf = h_scr[...].astype(jnp.bfloat16)
        gates = (gx_ref[i].astype(jnp.float32)
                 + jnp.dot(h_bf, whhT_ref[...],
                           preferred_element_type=jnp.float32))        # (B,4H)
        # TODO(synk): on v6e/v7x the sigmoid/tanh maps could run in bf16 for
        # ~2x EUP throughput; kept f32 here for accuracy and v5e portability.
        i_g = jax.nn.sigmoid(gates[:, 0 * H:1 * H])
        f_g = jax.nn.sigmoid(gates[:, 1 * H:2 * H])
        g_g = jnp.tanh(gates[:, 2 * H:3 * H])
        o_g = jax.nn.sigmoid(gates[:, 3 * H:4 * H])
        c_new = f_g * c_scr[...] + i_g * g_g
        h_new = o_g * jnp.tanh(c_new)
        active = i < valid               # mask padded tail steps
        c_scr[...] = jnp.where(active, c_new, c_scr[...])
        h_scr[...] = jnp.where(active, h_new, h_scr[...])
        out_ref[i] = h_new               # padded rows sliced off by wrapper
        return carry

    jax.lax.fori_loop(0, block_t, step, 0, unroll=True)

    @pl.when(tb == pl.num_programs(0) - 1)
    def _():
        hT_ref[...] = h_scr[...]
        cT_ref[...] = c_scr[...]


def lstm_recurrent(gates_x, h0, c0, w_hh_T, *, seq_len, block_t):
    # TODO(synk): on v7x (2 TensorCores) a leading batch-split "parallel" grid
    # axis would ~2x the serial recurrent phase when B//2 >= 8.
    T_pad, B, G = gates_x.shape                  # G = 4H
    H = h0.shape[-1]
    out_shape = (
        jax.ShapeDtypeStruct((T_pad, B, H), jnp.float32),  # per-step hidden
        jax.ShapeDtypeStruct((B, H), jnp.float32),         # final h
        jax.ShapeDtypeStruct((B, H), jnp.float32),         # final c
    )
    kernel = functools.partial(_lstm_rec_kernel, seq_len=seq_len)
    return pl.pallas_call(
        kernel,
        out_shape=out_shape,
        grid_spec=pltpu.PrefetchScalarGridSpec(
            num_scalar_prefetch=0,
            grid=(T_pad // block_t,),
            in_specs=[
                pl.BlockSpec((block_t, B, G), lambda t: (t, 0, 0)),  # gates_x (bf16)
                pl.BlockSpec((B, H), lambda t: (0, 0)),              # h0 (f32)
                pl.BlockSpec((B, H), lambda t: (0, 0)),              # c0 (f32)
                pl.BlockSpec((H, G), lambda t: (0, 0)),              # W_hh^T (bf16)
            ],
            out_specs=[
                pl.BlockSpec((block_t, B, H), lambda t: (t, 0, 0)),
                pl.BlockSpec((B, H), lambda t: (0, 0)),
                pl.BlockSpec((B, H), lambda t: (0, 0)),
            ],
            scratch_shapes=[pltpu.VMEM((B, H), jnp.float32),
                            pltpu.VMEM((B, H), jnp.float32)],
        ),
        compiler_params=pltpu.CompilerParams(
            dimension_semantics=("arbitrary",),
            vmem_limit_bytes=_VMEM_LIMIT),
    )(gates_x, h0, c0, w_hh_T)


def _pick_block_t(T):
    return min(_MAX_BLOCK_T, pl.next_power_of_2(max(T, 1)))


def _round_up(x, m):
    return ((x + m - 1) // m) * m


# ----------------------------------------------------------------------------
# Model wrapper
# ----------------------------------------------------------------------------
class LSTMLanguageModelPallas:
    def __init__(self, emb_dim, seq_length, hidden_dim, batch_size, vocab_size,
                 num_layers, dropout=0.5, key=jax.random.PRNGKey(0)):
        self.emb_dim = emb_dim
        self.seq_length = seq_length
        self.hidden_dim = hidden_dim
        self.batch_size = batch_size
        self.vocab_size = vocab_size
        self.num_layers = num_layers
        # TODO(synk): dropout treated as identity (eval mode); training-time
        # stochastic masks are not implemented in the kernels.

        keys = jax.random.split(key, 2 + 4 * num_layers)
        init_range = 0.1
        # Embedding: uniform(-0.1, 0.1) as in init_weights()
        self.embedding = jax.random.uniform(
            keys[0], (vocab_size, emb_dim), jnp.float32,
            -init_range, init_range)
        # fc: weight uniform(-0.1, 0.1) stored transposed (H, V); bias 0.
        # Vocab dim padded to a multiple of 128 for lane-dense stores.
        fc_w = jax.random.uniform(
            keys[1], (vocab_size, hidden_dim), jnp.float32,
            -init_range, init_range)
        self.fc_w_T = fc_w.T                                   # (H, V) f32 (ref)
        self.fc_b = jnp.zeros((vocab_size,), jnp.float32)
        self.vocab_pad = _round_up(vocab_size, 128)
        pad_v = self.vocab_pad - vocab_size
        self.fc_w_T_pad_bf16 = jnp.pad(
            self.fc_w_T, ((0, 0), (0, pad_v))).astype(jnp.bfloat16)
        self.fc_b_pad = jnp.pad(self.fc_b, (0, pad_v))
        # LSTM params: PyTorch default uniform(-1/sqrt(H), 1/sqrt(H)),
        # stored pre-transposed (in, 4H) / (H, 4H); biases folded together.
        k = 1.0 / math.sqrt(hidden_dim)
        self.lstm_params = []        # f32 (for reference)
        self.lstm_params_bf16 = []   # bf16 weights + f32 bias (for kernels)
        for layer in range(num_layers):
            in_size = emb_dim if layer == 0 else hidden_dim
            kk = keys[2 + 4 * layer: 2 + 4 * (layer + 1)]
            w_ih = jax.random.uniform(kk[0], (4 * hidden_dim, in_size),
                                      jnp.float32, -k, k)
            w_hh = jax.random.uniform(kk[1], (4 * hidden_dim, hidden_dim),
                                      jnp.float32, -k, k)
            b_ih = jax.random.uniform(kk[2], (4 * hidden_dim,),
                                      jnp.float32, -k, k)
            b_hh = jax.random.uniform(kk[3], (4 * hidden_dim,),
                                      jnp.float32, -k, k)
            w_ih_T = w_ih.T
            w_hh_T = w_hh.T
            bias = b_ih + b_hh
            self.lstm_params.append((w_ih_T, w_hh_T, bias))
            self.lstm_params_bf16.append(
                (w_ih_T.astype(jnp.bfloat16), w_hh_T.astype(jnp.bfloat16), bias))

    def init_hidden(self, bsz=None):
        if not bsz:
            bsz = self.batch_size
        z = jnp.zeros((self.num_layers, bsz, self.hidden_dim), jnp.float32)
        return (z, z)

    def __call__(self, x, hidden):
        # x: (seq_length, batch) int32 token ids
        h0, c0 = hidden
        T, B = x.shape
        H = self.hidden_dim
        block_t = _pick_block_t(T)
        T_pad = _round_up(T, block_t)

        emb = jnp.take(self.embedding, x, axis=0)         # glue gather (T,B,E)
        out = emb                                          # dropout == identity
        if T_pad != T:
            out = jnp.pad(out, ((0, T_pad - T), (0, 0), (0, 0)))

        h_finals, c_finals = [], []
        for layer in range(self.num_layers):
            w_ih_T_bf, w_hh_T_bf, bias = self.lstm_params_bf16[layer]
            in_dim = out.shape[-1]
            # Batched input projection over the whole (padded) sequence:
            # one big matmul, bf16 operands, f32 accumulate, bf16 output.
            gates_x = matmul_bias(
                out.reshape(T_pad * B, in_dim).astype(jnp.bfloat16),
                w_ih_T_bf, bias, out_dtype=jnp.bfloat16)
            gates_x = gates_x.reshape(T_pad, B, 4 * H)
            # Recurrent part: only h @ W_hh^T per step inside the kernel.
            out, hT, cT = lstm_recurrent(gates_x, h0[layer], c0[layer],
                                         w_hh_T_bf, seq_len=T, block_t=block_t)
            h_finals.append(hT)
            c_finals.append(cT)

        out = out[:T]                                      # drop padded steps
        # Full-M tile: the H x V_pad fc weight is streamed from HBM once.
        logits_pad = matmul_bias(
            out.reshape(T * B, H).astype(jnp.bfloat16),
            self.fc_w_T_pad_bf16, self.fc_b_pad,
            out_dtype=jnp.float32, full_m=True, tile_n=_VOCAB_TILE_N)
        logits = logits_pad[:, :self.vocab_size]
        return logits, (jnp.stack(h_finals), jnp.stack(c_finals))

    # Pure-JAX f32 reference (lax.scan) for correctness check.
    def reference(self, x, hidden):
        h0, c0 = hidden
        H = self.hidden_dim
        out = jnp.take(self.embedding, x, axis=0)
        h_fin, c_fin = [], []
        for layer in range(self.num_layers):
            w_ih_T, w_hh_T, bias = self.lstm_params[layer]

            def step(carry, x_t, w_ih_T=w_ih_T, w_hh_T=w_hh_T, bias=bias):
                h, c = carry
                g = x_t @ w_ih_T + h @ w_hh_T + bias
                i = jax.nn.sigmoid(g[:, :H])
                f = jax.nn.sigmoid(g[:, H:2 * H])
                gg = jnp.tanh(g[:, 2 * H:3 * H])
                o = jax.nn.sigmoid(g[:, 3 * H:])
                c = f * c + i * gg
                h = o * jnp.tanh(c)
                return (h, c), h

            (hT, cT), out = jax.lax.scan(step, (h0[layer], c0[layer]), out)
            h_fin.append(hT)
            c_fin.append(cT)
        logits = out.reshape(-1, H) @ self.fc_w_T + self.fc_b
        return logits, (jnp.stack(h_fin), jnp.stack(c_fin))


if __name__ == "__main__":
    # seq_length=21 deliberately not a multiple of block_t: exercises the
    # multi-time-block carry path AND the masked padded tail. vocab=50
    # exercises the lane-padding (50 -> 128) + slice path.
    emb_dim, seq_length, hidden_dim = 16, 21, 32
    batch_size, vocab_size, num_layers = 2, 50, 2

    model = LSTMLanguageModelPallas(emb_dim, seq_length, hidden_dim,
                                    batch_size, vocab_size, num_layers,
                                    key=jax.random.PRNGKey(0))

    tok_key = jax.random.PRNGKey(42)
    x = jax.random.randint(tok_key, (seq_length, batch_size), 0, vocab_size,
                           dtype=jnp.int32)
    hidden = model.init_hidden()

    logits, (h_n, c_n) = model(x, hidden)
    jax.block_until_ready((logits, h_n, c_n))

    assert logits.shape == (seq_length * batch_size, vocab_size)
    assert h_n.shape == (num_layers, batch_size, hidden_dim)
    assert c_n.shape == (num_layers, batch_size, hidden_dim)

    ref_logits, (ref_h, ref_c) = model.reference(x, hidden)
    # bf16 matmul operands (f32 accumulation) vs the f32 reference: use a
    # bf16-appropriate tolerance.
    assert jnp.allclose(logits, ref_logits, atol=2e-2, rtol=2e-2)
    assert jnp.allclose(h_n, ref_h, atol=2e-2, rtol=2e-2)
    assert jnp.allclose(c_n, ref_c, atol=2e-2, rtol=2e-2)

    print("KERNEL_OK")
</pallas_src>

<mosaic_0001>
module attributes {stable_mosaic.version = 11 : i64} {
  func.func @_matmul_bias_kernel(%arg0: i32, %arg1: i32, %arg2: memref<64x16xbf16, #tpu.memory_space<vmem>>, %arg3: memref<16x128xbf16, #tpu.memory_space<vmem>>, %arg4: memref<1x128xf32, #tpu.memory_space<vmem>>, %arg5: memref<64x128xbf16, #tpu.memory_space<vmem>>) attributes {dimension_semantics = [#tpu.dimension_semantics<parallel>, #tpu.dimension_semantics<parallel>], iteration_bounds = array<i64: 1, 1>, scalar_prefetch = 0 : i64, scratch_operands = 0 : i64, tpu.core_type = #tpu.core_type<tc>, window_params = [{transform_indices = @transform_0, window_bounds = array<i64: 64, 16>}, {transform_indices = @transform_1, window_bounds = array<i64: 16, 128>}, {transform_indices = @transform_2, window_bounds = array<i64: 1, 128>}, {transform_indices = @transform_3, window_bounds = array<i64: 64, 128>}]} {
    %c0 = arith.constant 0 : index
    %c0_0 = arith.constant 0 : index
    %0 = vector.load %arg2[%c0, %c0_0] : memref<64x16xbf16, #tpu.memory_space<vmem>>, vector<64x16xbf16>
    %c0_1 = arith.constant 0 : index
    %c0_2 = arith.constant 0 : index
    %1 = vector.load %arg3[%c0_1, %c0_2] : memref<16x128xbf16, #tpu.memory_space<vmem>>, vector<16x128xbf16>
    %cst = arith.constant dense<0.000000e+00> : vector<64x128xf32>
    %2 = tpu.matmul %0, %1, %cst {dimension_numbers = #tpu.dot_dimension_numbers<[1], [0], [0], [1], [0, 0, 1, 1], [], []>} : vector<64x16xbf16>, vector<16x128xbf16>, vector<64x128xf32> -> vector<64x128xf32>
    %c0_3 = arith.constant 0 : index
    %c0_4 = arith.constant 0 : index
    %3 = vector.load %arg4[%c0_3, %c0_4] : memref<1x128xf32, #tpu.memory_space<vmem>>, vector<1x128xf32>
    %4 = vector.broadcast %3 : vector<1x128xf32> to vector<64x128xf32>
    %5 = arith.addf %2, %4 : vector<64x128xf32>
    %6 = arith.truncf %5 : vector<64x128xf32> to vector<64x128xbf16>
    %c0_5 = arith.constant 0 : index
    %c0_6 = arith.constant 0 : index
    %7 = vector.load %arg5[%c0_5, %c0_6] : memref<64x128xbf16, #tpu.memory_space<vmem>>, vector<64x128xbf16>
    tpu.vector_store %arg5[%c0_5, %c0_6], %6 {strides = array<i32>} : memref<64x128xbf16, #tpu.memory_space<vmem>>, vector<64x128xbf16>,
    return
  }
  func.func @transform_0(%arg0: i32, %arg1: i32) -> (i32, i32) {
    %c0_i32 = arith.constant 0 : i32
    %c0_i32_0 = arith.constant 0 : i32
    return %arg0, %c0_i32 : i32, i32
  }
  func.func @transform_1(%arg0: i32, %arg1: i32) -> (i32, i32) {
    %c0_i32 = arith.constant 0 : i32
    %c0_i32_0 = arith.constant 0 : i32
    return %c0_i32, %arg1 : i32, i32
  }
  func.func @transform_2(%arg0: i32, %arg1: i32) -> (i32, i32) {
    %c0_i32 = arith.constant 0 : i32
    %c0_i32_0 = arith.constant 0 : i32
    return %c0_i32, %arg1 : i32, i32
  }
  func.func @transform_3(%arg0: i32, %arg1: i32) -> (i32, i32) {
    %c0_i32 = arith.constant 0 : i32
    return %arg0, %arg1 : i32, i32
  }
}

</mosaic_0001>

<llo_original>
// kernel: tpu_custom_call.1
$region0: #{tpu_custom_call.1}
  #allocation0 [shape = 'u32[]', space=smem, size = 0x4, offset = 0x4, fixed_abs, tag = 'smem constant byte address 0x4 - core index']
  #allocation1 [shape = 'u32[144,128]{1,0:T(1,128)}', space=vmem, size = 0x12000, scoped, tag = 'internal scratch']
  %s0 = inlined_call_operand.vmem [shape: bf16[64,16], index: 0, kind: input, shape index: {}]
  %s1 = inlined_call_operand.vmem [shape: bf16[16,128], index: 1, kind: input, shape index: {}]
  %s2 = inlined_call_operand.vmem [shape: f32[1,128], index: 2, kind: input, shape index: {}]
  %s3 = inlined_call_operand.hbm [shape: bf16[64,128], index: 3, kind: output, shape index: {}]
  %s4 = sld [smem:[#allocation0]]
  $region22: #{tpu_custom_call.1} parent=0
    _
  %s6 = ssub.s32 1, %s4
  %s7 = scalar_select 0, %s6, %s4
  $region1: #{tpu_custom_call.1} parent=0
    #allocation2 [shape = 'u8[16384]{0}', space=vmem, size = 0x4000, scoped, tag = 'output window, operand 0, single buffered']
    #allocation3 [shape = 's32[1]{0}', space=sflag, size = 0x4, scoped, tag = 'scoped memory for tpu_custom_call.1']
    %8 = vsyncpa [#allocation3], 0
    // Predicated region
    $region2: #{tpu_custom_call.1} parent=1 // pred_check
      _
    $region3: #{tpu_custom_call.1} parent=1 // pred_check_branch
      %10 = sbr.rel (0) target = $region5
    $region4: #{tpu_custom_call.1} parent=1 // pred_region
      _
    $region5: #{tpu_custom_call.1} parent=1 // pred_fallthru
      _
    // Predicated region
    $region6: #{tpu_custom_call.1} parent=1 // pred_check
      _
    $region7: #{tpu_custom_call.1} parent=1 // pred_check_branch
      %12 = sbr.rel (0) target = $region9
    $region8: #{tpu_custom_call.1} parent=1 // pred_region
      _
    $region9: #{tpu_custom_call.1} parent=1 // pred_fallthru
      _
    // Predicated region
    $region10: #{tpu_custom_call.1} parent=1 // pred_check
      _
    $region11: #{tpu_custom_call.1} parent=1 // pred_check_branch
      %14 = sbr.rel (0) target = $region13
    $region12: #{tpu_custom_call.1} parent=1 // pred_region
      _
    $region13: #{tpu_custom_call.1} parent=1 // pred_fallthru
      _
    %v16 = vld [vmem:[%s0] sm:$0xf]
    %v17 = vld [vmem:[%s0 + $0x4] sm:$0xf]
    %v18 = vld [vmem:[%s0 + $0x8] sm:$0xf]
    %v19 = vld [vmem:[%s0 + $0xc] sm:$0xf]
    %v20 = vld [vmem:[%s0 + $0x10] sm:$0xf]
    %v21 = vld [vmem:[%s0 + $0x14] sm:$0xf]
    %v22 = vld [vmem:[%s0 + $0x18] sm:$0xf]
    %v23 = vld [vmem:[%s0 + $0x1c] sm:$0xf]
    %v24 = vld [vmem:[%s1] sm:$0xf]
    %v25 = vld [vmem:[%s1 + $0x4] sm:$0xf]
    %v26 = vld [vmem:[%s2] sm:$0x1]
    %v28 = vlaneseq
    %v29 = vshrl.u32 %v28, 7
    %v30 = vsub.s32 0, %v29
    %v31 = vrot.slane %v26, %v30
    %v41 = vunpack.c.l.b16 %v16
    %v42 = vunpack.c.l.b16 %v17
    %v43 = vunpack.c.l.b16 %v18
    %v44 = vunpack.c.l.b16 %v19
    %v45 = vunpack.c.l.b16 %v20
    %v46 = vunpack.c.l.b16 %v21
    %v47 = vunpack.c.l.b16 %v22
    %v48 = vunpack.c.l.b16 %v23
    %v49 = vpack.c.b16 %v42, %v41
    %v50 = vpack.c.b16 %v44, %v43
    %v51 = vpack.c.b16 %v46, %v45
    %v52 = vpack.c.b16 %v48, %v47
    %v55 = vunpack.c.l.b16 %v24
    %v56 = vunpack.c.l.b16 %v25
    %v57 = vpack.c.b16 %v56, %v55
    %vm59 = vcmask 130048
    %v61 = vsel %vm59, %v49, 0
    %v64 = vsel %vm59, %v50, 0
    %v67 = vsel %vm59, %v51, 0
    %v70 = vsel %vm59, %v52, 0
    %72 = vmatprep.subr.bf16.mxu0 0
    %73 = vmatpush1.bf16.msra.mxu0 0
    %74 = vmatprep.subr.bf16.mxu0 0
    %75 = vmatpush1.bf16.msra.mxu0 0
    %76 = vmatprep.subr.bf16.mxu0 0
    %77 = vmatpush1.bf16.msra.mxu0 0
    %78 = vmatprep.subr.bf16.mxu0 0
    %79 = vmatpush1.bf16.msra.mxu0 0
    %80 = vmatprep.subr.bf16.mxu0 0
    %81 = vmatpush1.bf16.msra.mxu0 0
    %82 = vmatprep.subr.bf16.mxu0 0
    %83 = vmatpush1.bf16.msra.mxu0 0
    %84 = vmatprep.subr.bf16.mxu0 0
    %85 = vmatpush1.bf16.msra.mxu0 0
    %86 = vmatprep.subr.bf16.mxu0 0
    %87 = vmatpush1.bf16.msra.mxu0 %v57
    %88 = vmatprep.subr.bf16.mxu0 0
    %89 = vmatpush2.bf16.msra.mxu0 0
    %90 = vmatprep.subr.bf16.mxu0 0
    %91 = vmatpush2.bf16.msra.mxu0 0
    %92 = vmatprep.subr.bf16.mxu0 0
    %93 = vmatpush2.bf16.msra.mxu0 0
    %94 = vmatprep.subr.bf16.mxu0 0
    %95 = vmatpush2.bf16.msra.mxu0 0
    %96 = vmatprep.subr.bf16.mxu0 0
    %97 = vmatpush2.bf16.msra.mxu0 0
    %98 = vmatprep.subr.bf16.mxu0 0
    %99 = vmatpush2.bf16.msra.mxu0 0
    %100 = vmatprep.subr.bf16.mxu0 0
    %101 = vmatpush2.bf16.msra.mxu0 0
    %102 = vmatprep.subr.bf16.mxu0 0
    %103 = vmatpush2.bf16.msra.mxu0 0
    %104 = vmatprep.mubr.bf16.mxu0 0
    %105 = vmatmul.mubr.bf16.gmra.mxu0 %v61
    %v106 = vpop.f32.mrf.mxu0
    %v107 = vadd.f32 %v31, %v106
    %v108 = vpop.f32.mrf.mxu0
    %v109 = vpop.f32.mrf.mxu0
    %v110 = vadd.f32 %v31, %v109
    %v111 = vpop.f32.mrf.mxu0
    %112 = vmatprep.mubr.bf16.mxu0 0
    %113 = vmatmul.mubr.bf16.gmra.mxu0 %v64
    %v114 = vpop.f32.mrf.mxu0
    %v115 = vadd.f32 %v31, %v114
    %v116 = vpop.f32.mrf.mxu0
    %v117 = vpop.f32.mrf.mxu0
    %v118 = vadd.f32 %v31, %v117
    %v119 = vpop.f32.mrf.mxu0
    %120 = vmatprep.mubr.bf16.mxu0 0
    %121 = vmatmul.mubr.bf16.gmra.mxu0 %v67
    %v122 = vpop.f32.mrf.mxu0
    %v123 = vadd.f32 %v31, %v122
    %v124 = vpop.f32.mrf.mxu0
    %v125 = vpop.f32.mrf.mxu0
    %v126 = vadd.f32 %v31, %v125
    %v127 = vpop.f32.mrf.mxu0
    %128 = vmatprep.mubr.bf16.mxu0 0
    %129 = vmatmul.mubr.bf16.gmra.mxu0 %v70
    %v130 = vpop.f32.mrf.mxu0
    %v131 = vadd.f32 %v31, %v130
    %v132 = vpop.f32.mrf.mxu0
    %v133 = vpop.f32.mrf.mxu0
    %v134 = vadd.f32 %v31, %v133
    %v135 = vpop.f32.mrf.mxu0
    %136 = vdwg.mxu0
    %v137 = vpack.c.bf16 %v110, %v107
    %v138 = vpack.c.bf16 %v118, %v115
    %v139 = vpack.c.bf16 %v126, %v123
    %v140 = vpack.c.bf16 %v134, %v131
    %v145 = vunpack.c.l.b16 %v137
    %v146 = vunpack.c.h.b16 %v137
    %v147 = vunpack.c.l.b16 %v138
    %v148 = vunpack.c.h.b16 %v138
    %v149 = vunpack.c.l.b16 %v139
    %v150 = vunpack.c.h.b16 %v139
    %v151 = vunpack.c.l.b16 %v140
    %v152 = vunpack.c.h.b16 %v140
    %v153 = vpack.c.b16 %v145, %v145
    %v154 = vpack.c.b16 %v146, %v146
    %v155 = vpack.c.b16 %v147, %v147
    %v156 = vpack.c.b16 %v148, %v148
    %v157 = vpack.c.b16 %v149, %v149
    %v158 = vpack.c.b16 %v150, %v150
    %v159 = vpack.c.b16 %v151, %v151
    %v160 = vpack.c.b16 %v152, %v152
    %169 = vst [vmem:[#allocation2] sm:$0xf] %v153
    %170 = vst [vmem:[#allocation2 + $0x4] sm:$0xf] %v154
    %171 = vst [vmem:[#allocation2 + $0x8] sm:$0xf] %v155
    %172 = vst [vmem:[#allocation2 + $0xc] sm:$0xf] %v156
    %173 = vst [vmem:[#allocation2 + $0x10] sm:$0xf] %v157
    %174 = vst [vmem:[#allocation2 + $0x14] sm:$0xf] %v158
    %175 = vst [vmem:[#allocation2 + $0x18] sm:$0xf] %v159
    %176 = vst [vmem:[#allocation2 + $0x1c] sm:$0xf] %v160
    // Predicated region
    $region14: #{tpu_custom_call.1} parent=1 // pred_check
      _
    $region15: #{tpu_custom_call.1} parent=1 // pred_check_branch
      %178 = sbr.rel (0) target = $region17
    $region16: #{tpu_custom_call.1} parent=1 // pred_region
      %s180 = ssub.s32 512, 512
      %181 = vsyncadd [#allocation3], %s180
      %s182 = sshll.u32 [#allocation2], 4
      %s183 = int_to_ptr.vmem [resolvable:$true] %s182
      %188 = dma.vmem_to_hbm [thread:$0]  %s183, 512, %s3, [#allocation3], 64, 64, 4
    $region17: #{tpu_custom_call.1} parent=1 // pred_fallthru
      _
    // Predicated region
    $region18: #{tpu_custom_call.1} parent=1 // pred_check
      _
    $region19: #{tpu_custom_call.1} parent=1 // pred_check_branch
      %190 = sbr.rel (0) target = $region21
    $region20: #{tpu_custom_call.1} parent=1 // pred_region
      %191 = dma.done [#allocation3], 512
    $region21: #{tpu_custom_call.1} parent=1 // pred_fallthru
      _
    %192 = vsyncpa [#allocation3], 1

</llo_original>
